<compile_context>
chip_gen: v6e
topology: v6e:2x2x1
jax: 0.10.0
libtpu: 0.0.40
codegen_flags: <defaults>
</compile_context>

<pallas_src>
import jax
import jax.numpy as jnp
from jax.experimental import pallas as pl
from jax.experimental.pallas import tpu as pltpu


def _round_up(x, m):
    return ((x + m - 1) // m) * m


def _logreg_kernel(x_ref, w_ref, b_ref, o_ref):
    # x_ref: (TILE_N, F) VMEM; w_ref: (F, 1) VMEM; b_ref: (1, 1) SMEM;
    # o_ref: (1, 1, TILE_N) VMEM -- lane-dense output slab.
    x = x_ref[...]                      # (TILE_N, F), already f32
    w = w_ref[...]                      # (F, 1) == W^T column
    b = b_ref[0, 0]                     # scalar bias from SMEM
    # Contraction on the (otherwise idle) MXU with f32 accumulation.
    z_col = jnp.dot(x, w, preferred_element_type=jnp.float32)   # (TILE_N, 1)
    # Relayout to lane-dense (1, TILE_N) *before* the epilogue so the bias add,
    # the sigmoid and the store all operate on full 128-lane vectors.
    z_row = jnp.transpose(z_col)                                 # (1, TILE_N)
    o_ref[0] = jax.nn.sigmoid(z_row + b).astype(o_ref.dtype)


def logistic_regression_uniform(x, weight, bias, *, tile_rows=None):
    """Pallas equivalent of torch.sigmoid(nn.Linear(F, 1)(x)).

    x: (N, F) f32; weight: (1, F) f32; bias: (1,) f32 -> (N, 1) f32.
    """
    n, f = x.shape
    padded_row_bytes = _round_up(max(f, 1), 128) * 4   # f32, lanes pad to 128

    # Per-generation VMEM budget (v7x: 64 MiB per TensorCore; v5e/v6e: 128 MiB).
    try:
        vmem_cap = int(pltpu.get_tpu_info().vmem_capacity_bytes)
    except Exception:
        vmem_cap = 64 << 20                            # safe (v7x-sized) fallback
    per_buf_budget = min(16 << 20, vmem_cap // 6)

    if tile_rows is not None:
        tile_n = int(tile_rows)                        # test / tuning override
    elif n < 128:
        tile_n = n                                     # tiny input: single tile
    else:
        max_rows = max(128, per_buf_budget // padded_row_bytes)
        tile_n = max(128, (min(n, max_rows) // 128) * 128)
    num_tiles = pl.cdiv(n, tile_n)

    w_col = weight.reshape(f, 1)                       # (F, 1) == W^T
    b2d = bias.reshape(1, 1).astype(jnp.float32)

    # Scoped-VMEM limit: 2x double-buffered x tile + weight + output + slack,
    # clamped below physical capacity (matters on v7x's 64 MiB per core).
    x_tile_bytes = tile_n * padded_row_bytes
    w_bytes = max(f, 1) * 128 * 4
    o_tile_bytes = 8 * _round_up(tile_n, 128) * 4
    need = 2 * (x_tile_bytes + w_bytes + o_tile_bytes) + (4 << 20)
    vmem_limit = int(min(vmem_cap - (8 << 20), max(32 << 20, need)))

    out = pl.pallas_call(
        _logreg_kernel,
        out_shape=jax.ShapeDtypeStruct((num_tiles, 1, tile_n), jnp.float32),
        grid=(num_tiles,),
        in_specs=[
            # x: large row tiles, pipelined HBM->VMEM DMA.
            pl.BlockSpec((tile_n, f), lambda i: (i, 0)),
            # weight column: same block every step (fetched once, stays resident).
            pl.BlockSpec((f, 1), lambda i: (0, 0)),
            # bias: single scalar, lives in SMEM.
            pl.BlockSpec(memory_space=pltpu.MemorySpace.SMEM),
        ],
        out_specs=pl.BlockSpec((1, 1, tile_n), lambda i: (i, 0, 0)),
        compiler_params=pltpu.CompilerParams(
            dimension_semantics=("parallel",),
            vmem_limit_bytes=vmem_limit,
        ),
        cost_estimate=pl.CostEstimate(
            flops=2 * n * f,
            transcendentals=n,
            bytes_accessed=n * f * 4 + n * 4 + f * 4 + 4,
        ),
    )(x, w_col, b2d)

    out = out.reshape(num_tiles * tile_n, 1)
    if num_tiles * tile_n != n:
        out = out[:n]                                  # drop padded tail rows
    return out


if __name__ == "__main__":
    key = jax.random.PRNGKey(0)
    kx, kw, kb, kx2 = jax.random.split(key, 4)

    batch = 8
    input_features = 32

    # Deterministic parameter init mirroring the module:
    #   weight ~ Uniform(0, 1)  (torch.nn.init.uniform_(w, a=0, b=1))
    #   bias   ~ default nn.Linear init Uniform(-1/sqrt(F), 1/sqrt(F))
    weight = jax.random.uniform(kw, (1, input_features), dtype=jnp.float32,
                                minval=0.0, maxval=1.0)
    bound = 1.0 / (input_features ** 0.5)
    bias = jax.random.uniform(kb, (1,), dtype=jnp.float32,
                              minval=-bound, maxval=bound)

    # Primary small test (single tile, matches the module's forward).
    x = jax.random.normal(kx, (batch, input_features), dtype=jnp.float32)
    out = jax.block_until_ready(logistic_regression_uniform(x, weight, bias))
    ref = jax.nn.sigmoid(x @ weight.T + bias)
    assert out.shape == (batch, 1)
    assert jnp.allclose(out, ref, atol=1e-5, rtol=1e-5)

    # Secondary test: multi-tile path with a partial final tile.
    x2 = jax.random.normal(kx2, (300, input_features), dtype=jnp.float32)
    out2 = jax.block_until_ready(
        logistic_regression_uniform(x2, weight, bias, tile_rows=128))
    ref2 = jax.nn.sigmoid(x2 @ weight.T + bias)
    assert out2.shape == (300, 1)
    assert jnp.allclose(out2, ref2, atol=1e-5, rtol=1e-5)

    print("KERNEL_OK")
</pallas_src>

<mosaic_0001>
module attributes {stable_mosaic.version = 11 : i64} {
  func.func @_logreg_kernel(%arg0: i32, %arg1: memref<8x32xf32, #tpu.memory_space<vmem>>, %arg2: memref<32x1xf32, #tpu.memory_space<vmem>>, %arg3: memref<1x1xf32, #tpu.memory_space<smem>>, %arg4: memref<1x1x8xf32, #tpu.memory_space<vmem>>) attributes {dimension_semantics = [#tpu.dimension_semantics<parallel>], iteration_bounds = array<i64: 1>, scalar_prefetch = 0 : i64, scratch_operands = 0 : i64, tpu.core_type = #tpu.core_type<tc>, window_params = [{transform_indices = @transform_0, window_bounds = array<i64: 8, 32>}, {pipeline_mode = #tpu.pipeline_mode<synchronous>, transform_indices = @transform_1, window_bounds = array<i64: 32, 1>}, {transform_indices = @transform_2, window_bounds = array<i64: 1, 1>}, {transform_indices = @transform_3, window_bounds = array<i64: 1, 1, 8>}]} {
    %c0 = arith.constant 0 : index
    %c0_0 = arith.constant 0 : index
    %0 = vector.load %arg1[%c0, %c0_0] : memref<8x32xf32, #tpu.memory_space<vmem>>, vector<8x32xf32>
    %c0_1 = arith.constant 0 : index
    %c0_2 = arith.constant 0 : index
    %1 = vector.load %arg2[%c0_1, %c0_2] : memref<32x1xf32, #tpu.memory_space<vmem>>, vector<32x1xf32>
    %c0_3 = arith.constant 0 : index
    %c0_4 = arith.constant 0 : index
    %2 = memref.load %arg3[%c0_3, %c0_4] : memref<1x1xf32, #tpu.memory_space<smem>>
    %cst = arith.constant dense<0.000000e+00> : vector<8x1xf32>
    %3 = tpu.matmul %0, %1, %cst {dimension_numbers = #tpu.dot_dimension_numbers<[1], [0], [0], [1], [0, 0, 1, 1], [], []>} : vector<8x32xf32>, vector<32x1xf32>, vector<8x1xf32> -> vector<8x1xf32>
    %4 = tpu.transpose %3, [1, 0] : vector<8x1xf32> -> vector<1x8xf32>
    %5 = vector.broadcast %2 : f32 to vector<1x8xf32>
    %6 = arith.addf %4, %5 : vector<1x8xf32>
    %7 = arith.negf %6 : vector<1x8xf32>
    %8 = math.exp %7 : vector<1x8xf32>
    %cst_5 = arith.constant 1.000000e+00 : f32
    %9 = vector.broadcast %cst_5 : f32 to vector<1x8xf32>
    %10 = arith.addf %9, %8 : vector<1x8xf32>
    %11 = arith.divf %9, %10 : vector<1x8xf32>
    %c0_6 = arith.constant 0 : index
    %c0_7 = arith.constant 0 : index
    %c0_8 = arith.constant 0 : index
    %12 = vector.load %arg4[%c0_6, %c0_7, %c0_8] : memref<1x1x8xf32, #tpu.memory_space<vmem>>, vector<1x1x8xf32>
    %13 = vector.shape_cast %12 : vector<1x1x8xf32> to vector<1x8xf32>
    %14 = vector.shape_cast %11 : vector<1x8xf32> to vector<1x1x8xf32>
    tpu.vector_store %arg4[%c0_6, %c0_7, %c0_8], %14 {strides = array<i32>} : memref<1x1x8xf32, #tpu.memory_space<vmem>>, vector<1x1x8xf32>,
    return
  }
  func.func @transform_0(%arg0: i32) -> (i32, i32) {
    %c0_i32 = arith.constant 0 : i32
    %c0_i32_0 = arith.constant 0 : i32
    return %arg0, %c0_i32 : i32, i32
  }
  func.func @transform_1(%arg0: i32) -> (i32, i32) {
    %c0_i32 = arith.constant 0 : i32
    %c0_i32_0 = arith.constant 0 : i32
    %c0_i32_1 = arith.constant 0 : i32
    return %c0_i32, %c0_i32_0 : i32, i32
  }
  func.func @transform_2(%arg0: i32) -> (i32, i32) {
    %c0_i32 = arith.constant 0 : i32
    %c0_i32_0 = arith.constant 0 : i32
    %c0_i32_1 = arith.constant 0 : i32
    return %c0_i32, %c0_i32_0 : i32, i32
  }
  func.func @transform_3(%arg0: i32) -> (i32, i32, i32) {
    %c0_i32 = arith.constant 0 : i32
    %c0_i32_0 = arith.constant 0 : i32
    %c0_i32_1 = arith.constant 0 : i32
    return %arg0, %c0_i32, %c0_i32_0 : i32, i32, i32
  }
}

</mosaic_0001>

<llo_original>
// kernel: tpu_custom_call.1
$region0: #{tpu_custom_call.1}
  #allocation0 [shape = 'u32[]', space=smem, size = 0x4, offset = 0x4, fixed_abs, tag = 'smem constant byte address 0x4 - core index']
  #allocation1 [shape = 'u32[144,128]{1,0:T(1,128)}', space=vmem, size = 0x12000, scoped, tag = 'internal scratch']
  #allocation2 [shape = 'f32[1,1]{1,0:T(1,128)S(6)}', space=smem, size = 0x200, scoped, tag = 'scoped memory for tpu_custom_call.1']
  %s0 = inlined_call_operand.vmem [shape: f32[8,32], index: 0, kind: input, shape index: {}]
  %s1 = inlined_call_operand.vmem [shape: f32[32,1], index: 1, kind: input, shape index: {}]
  %s2 = inlined_call_operand.<no memory space> [shape: f32[1,1], index: 2, kind: input, shape index: {}]
  %s3 = inlined_call_operand.hbm [shape: f32[1,1,8], index: 3, kind: output, shape index: {}]
  %s4 = sld [smem:[#allocation0]]
  $region22: #{tpu_custom_call.1} parent=0
    _
  %s6 = ssub.s32 1, %s4
  %s7 = scalar_select 0, %s6, %s4
  %8 = sst [smem:[#allocation2]] %s2
  $region1: #{tpu_custom_call.1} parent=0
    #allocation3 [shape = 'u8[512]{0}', space=vmem, size = 0x400, scoped, tag = 'output window, operand 0, single buffered']
    #allocation4 [shape = 's32[1]{0}', space=sflag, size = 0x4, scoped, tag = 'scoped memory for tpu_custom_call.1']
    %9 = vsyncpa [#allocation4], 0
    // Predicated region
    $region2: #{tpu_custom_call.1} parent=1 // pred_check
      _
    $region3: #{tpu_custom_call.1} parent=1 // pred_check_branch
      %11 = sbr.rel (0) target = $region5
    $region4: #{tpu_custom_call.1} parent=1 // pred_region
      _
    $region5: #{tpu_custom_call.1} parent=1 // pred_fallthru
      _
    // Predicated region
    $region6: #{tpu_custom_call.1} parent=1 // pred_check
      _
    $region7: #{tpu_custom_call.1} parent=1 // pred_check_branch
      %13 = sbr.rel (0) target = $region9
    $region8: #{tpu_custom_call.1} parent=1 // pred_region
      _
    $region9: #{tpu_custom_call.1} parent=1 // pred_fallthru
      _
    // Predicated region
    $region10: #{tpu_custom_call.1} parent=1 // pred_check
      _
    $region11: #{tpu_custom_call.1} parent=1 // pred_check_branch
      %15 = sbr.rel (0) target = $region13
    $region12: #{tpu_custom_call.1} parent=1 // pred_region
      _
    $region13: #{tpu_custom_call.1} parent=1 // pred_fallthru
      _
    %v16 = vld [vmem:[%s0] sm:$0xff]
    %v17 = vld [vmem:[%s1] sm:$0xff]
    %v18 = vld [vmem:[%s1 + $0x8] sm:$0xff]
    %v19 = vld [vmem:[%s1 + $0x10] sm:$0xff]
    %v20 = vld [vmem:[%s1 + $0x18] sm:$0xff]
    %s21 = sld [smem:[#allocation2]]
    %vm22 = vcmask 261120
    %v24 = vsel %vm22, %v16, 0
    %26 = vmatprep.subr.mxu0 0.0
    %27 = vmatpush1.msra.mxu0 0.0
    %28 = vmatprep.subr.mxu0 0.0
    %29 = vmatpush1.msra.mxu0 0.0
    %30 = vmatprep.subr.mxu0 0.0
    %31 = vmatpush1.msra.mxu0 0.0
    %32 = vmatprep.subr.mxu0 0.0
    %33 = vmatpush1.msra.mxu0 0.0
    %34 = vmatprep.subr.mxu0 0.0
    %35 = vmatpush1.msra.mxu0 0.0
    %36 = vmatprep.subr.mxu0 0.0
    %37 = vmatpush1.msra.mxu0 0.0
    %38 = vmatprep.subr.mxu0 0.0
    %39 = vmatpush1.msra.mxu0 0.0
    %40 = vmatprep.subr.mxu0 0.0
    %41 = vmatpush1.msra.mxu0 0.0
    %42 = vmatprep.subr.mxu0 0.0
    %43 = vmatpush1.msra.mxu0 0.0
    %44 = vmatprep.subr.mxu0 0.0
    %45 = vmatpush1.msra.mxu0 0.0
    %46 = vmatprep.subr.mxu0 0.0
    %47 = vmatpush1.msra.mxu0 0.0
    %48 = vmatprep.subr.mxu0 0.0
    %49 = vmatpush1.msra.mxu0 0.0
    %50 = vmatprep.subr.mxu0 0.0
    %51 = vmatpush1.msra.mxu0 %v20
    %52 = vmatprep.subr.mxu0 0.0
    %53 = vmatpush1.msra.mxu0 %v19
    %54 = vmatprep.subr.mxu0 0.0
    %55 = vmatpush1.msra.mxu0 %v18
    %56 = vmatprep.subr.mxu0 0.0
    %57 = vmatpush1.msra.mxu0 %v17
    %58 = vmatprep.subr.mxu0 0.0
    %59 = vmatpush2.msra.mxu0 0.0
    %60 = vmatprep.subr.mxu0 0.0
    %61 = vmatpush2.msra.mxu0 0.0
    %62 = vmatprep.subr.mxu0 0.0
    %63 = vmatpush2.msra.mxu0 0.0
    %64 = vmatprep.subr.mxu0 0.0
    %65 = vmatpush2.msra.mxu0 0.0
    %66 = vmatprep.subr.mxu0 0.0
    %67 = vmatpush2.msra.mxu0 0.0
    %68 = vmatprep.subr.mxu0 0.0
    %69 = vmatpush2.msra.mxu0 0.0
    %70 = vmatprep.subr.mxu0 0.0
    %71 = vmatpush2.msra.mxu0 0.0
    %72 = vmatprep.subr.mxu0 0.0
    %73 = vmatpush2.msra.mxu0 0.0
    %74 = vmatprep.subr.mxu0 0.0
    %75 = vmatpush2.msra.mxu0 0.0
    %76 = vmatprep.subr.mxu0 0.0
    %77 = vmatpush2.msra.mxu0 0.0
    %78 = vmatprep.subr.mxu0 0.0
    %79 = vmatpush2.msra.mxu0 0.0
    %80 = vmatprep.subr.mxu0 0.0
    %81 = vmatpush2.msra.mxu0 0.0
    %82 = vmatprep.subr.mxu0 0.0
    %83 = vmatpush2.msra.mxu0 0.0
    %84 = vmatprep.subr.mxu0 0.0
    %85 = vmatpush2.msra.mxu0 0.0
    %86 = vmatprep.subr.mxu0 0.0
    %87 = vmatpush2.msra.mxu0 0.0
    %88 = vmatprep.subr.mxu0 0.0
    %89 = vmatpush2.msra.mxu0 0.0
    %90 = vmatprep.mubr.f32.mxu0 0.0
    %91 = vmatmul.mubr.f32.gmra.mxu0 %v24
    %v92 = vpop.f32.mrf.mxu0
    %v93 = vadd.f32 0.0, %v92
    %v94 = vpop.f32.mrf.mxu0
    %95 = vdwg.mxu0
    %96 = vxpose.xlu0.b32.start [1/16] %v93, 128
    %97 = vxpose.xlu0.b32.cont [2/16] 0.0, 128
    %98 = vxpose.xlu0.b32.cont [3/16] 0.0, 128
    %99 = vxpose.xlu0.b32.cont [4/16] 0.0, 128
    %100 = vxpose.xlu0.b32.cont [5/16] 0.0, 128
    %101 = vxpose.xlu0.b32.cont [6/16] 0.0, 128
    %102 = vxpose.xlu0.b32.cont [7/16] 0.0, 128
    %103 = vxpose.xlu0.b32.cont [8/16] 0.0, 128
    %104 = vxpose.xlu0.b32.cont [9/16] 0.0, 128
    %105 = vxpose.xlu0.b32.cont [10/16] 0.0, 128
    %106 = vxpose.xlu0.b32.cont [11/16] 0.0, 128
    %107 = vxpose.xlu0.b32.cont [12/16] 0.0, 128
    %108 = vxpose.xlu0.b32.cont [13/16] 0.0, 128
    %109 = vxpose.xlu0.b32.cont [14/16] 0.0, 128
    %110 = vxpose.xlu0.b32.cont [15/16] 0.0, 128
    %111 = vxpose.xlu0.b32.end [16/16] 0.0, 128
    %v112 = vpop.trf.xlu0
    %v113 = vpop.trf.xlu0
    %v114 = vpop.trf.xlu0
    %v115 = vpop.trf.xlu0
    %v116 = vpop.trf.xlu0
    %v117 = vpop.trf.xlu0
    %v118 = vpop.trf.xlu0
    %v119 = vpop.trf.xlu0
    %v120 = vpop.trf.xlu0
    %v121 = vpop.trf.xlu0
    %v122 = vpop.trf.xlu0
    %v123 = vpop.trf.xlu0
    %v124 = vpop.trf.xlu0
    %v125 = vpop.trf.xlu0
    %v126 = vpop.trf.xlu0
    %v127 = vpop.trf.xlu0
    %v128 = vstv %s21
    %v129 = vadd.f32 %v112, %v128
    %v130 = vxor.u32 %v129, 2147483648
    %v131 = vmul.f32 %v130, 1.442695
    %v132 = vpow.pop %v131
    %v133 = vadd.f32 %v132, 1.0
    %v134 = vrcp.pop %v133
    %v135 = vmul.f32 1.0, %v134
    %vm136 = vcmask 57344
    %137 = vst.msk [vmem:[#allocation3] sm:$0x1] %vm136, %v135
    // Predicated region
    $region14: #{tpu_custom_call.1} parent=1 // pred_check
      _
    $region15: #{tpu_custom_call.1} parent=1 // pred_check_branch
      %139 = sbr.rel (0) target = $region17
    $region16: #{tpu_custom_call.1} parent=1 // pred_region
      %s141 = ssub.s32 16, 16
      %142 = vsyncadd [#allocation4], %s141
      %s144 = sshll.u32 [#allocation3], 4
      %s145 = int_to_ptr.vmem [resolvable:$true] %s144
      %147 = dma.vmem_to_hbm [thread:$0]  %s145, 16, %s3, [#allocation4]
    $region17: #{tpu_custom_call.1} parent=1 // pred_fallthru
      _
    // Predicated region
    $region18: #{tpu_custom_call.1} parent=1 // pred_check
      _
    $region19: #{tpu_custom_call.1} parent=1 // pred_check_branch
      %149 = sbr.rel (0) target = $region21
    $region20: #{tpu_custom_call.1} parent=1 // pred_region
      %150 = dma.done [#allocation4], 16
    $region21: #{tpu_custom_call.1} parent=1 // pred_fallthru
      _
    %151 = vsyncpa [#allocation4], 1

</llo_original>
